<compile_context>
chip_gen: v5e
topology: v5e:2x2
jax: 0.10.0
libtpu: 0.0.40
codegen_flags: <defaults>
</compile_context>

<pallas_src>
import jax
import jax.numpy as jnp
import numpy as np
from jax.experimental import pallas as pl
from jax.experimental.pallas import tpu as pltpu

NUM_NODES = 2  # fixed in the reference implementation


def _round_up(x, m):
    return ((x + m - 1) // m) * m


def _vmem_limit_bytes():
    """Scoped-VMEM limit derived from the actual chip (v7x has 64 MiB physical)."""
    cap = 128 * 1024 * 1024
    try:
        info = pltpu.get_tpu_info()
        cap = int(getattr(info, "vmem_capacity_bytes", cap))
    except Exception:
        pass
    return max(min(cap // 2, 64 * 1024 * 1024), 16 * 1024 * 1024)


def _make_kernel(B_total, GC, T, TB, num_tiles, scale, needs_mask):
    tail = B_total - (num_tiles - 1) * TB   # valid rows in the last tile (compile-time const)

    def kernel(expand_ref, base_ref, diff_ref, pred_ref, side_ref, out_ref, acc_ref):
        i = pl.program_id(0)
        last = pl.num_programs(0) - 1

        @pl.when(i == 0)
        def _init():
            acc_ref[...] = jnp.zeros(acc_ref.shape, acc_ref.dtype)
            out_ref[...] = jnp.zeros(out_ref.shape, out_ref.dtype)

        # Packed per-row side block: [target tiled to GC | a0 | a1 | w0].
        # Target occupies lanes [0, GC) so it is lane-aligned with pred (no shifts on the
        # big operand); only the tiny (TB, T)/(TB, 1) fields sit at non-zero lane offsets.
        target_t = side_ref[:, 0:GC]                         # (TB, GC)
        a0 = side_ref[:, GC:GC + T]                          # (TB, T)
        a1 = side_ref[:, GC + T:GC + 2 * T]                  # (TB, T)
        w = side_ref[:, GC + 2 * T:GC + 2 * T + 1]           # (TB, 1)

        # One whole-block VPU op for the L1 terms.
        abs_diff = jnp.abs(pred_ref[...] - target_t)         # (TB, GC)

        # Node selection (ties -> node 0, matching np/torch argmax), then one tiny {0,1}
        # MXU matmul against the resident expansion matrix to broadcast each tree's
        # selection across its NUM_NODES*C columns (exact regardless of MXU precision:
        # both operands are exactly {0,1} and each output has a single nonzero term).
        sel1 = (a1 > a0).astype(jnp.float32)                 # (TB, T)
        sel_exp = jnp.dot(sel1, expand_ref[...],
                          preferred_element_type=jnp.float32)  # (TB, GC), values in {0,1}
        # decay = (value if node0 wins) + sel * ((value if node1 wins) - (value if node0 wins))
        decay = base_ref[...] + sel_exp * diff_ref[...]      # (TB, GC), one FMA, no selects
        weighted = abs_diff * decay * w                      # (TB, GC)

        if needs_mask:
            # Only the last tile has rows clipped by the DMA; non-final steps skip the mask.
            @pl.when(i != last)
            def _acc_full():
                acc_ref[...] = acc_ref[...] + jnp.sum(weighted, axis=0, keepdims=True)

            @pl.when(i == last)
            def _acc_masked():
                row = jax.lax.broadcasted_iota(jnp.int32, (TB, 1), 0)
                # Replace (never multiply) the clipped-DMA garbage rows.
                masked = jnp.where(row < tail, weighted, 0.0)
                acc_ref[...] = acc_ref[...] + jnp.sum(masked, axis=0, keepdims=True)
        else:
            acc_ref[...] = acc_ref[...] + jnp.sum(weighted, axis=0, keepdims=True)

        @pl.when(i == last)
        def _finalize():
            # Single cross-lane reduction + compile-time-constant scaling at the very end.
            out_ref[...] = jnp.sum(acc_ref[...], keepdims=True) * scale

    return kernel


def nsl1_loss_pallas(pred, aa, target, weight, rho_min, rho_max, loss_weight=1.0,
                     max_rows_per_tile=None):
    """NSL1Loss forward with reduction='mean', avg_factor=None (module defaults).

    TODO(synk): 'sum' / 'none' reduction_override variants not implemented; the per-call
    nondeterministic np.random.uniform rho draws are taken as deterministic (1, T) inputs.
    """
    pred = jnp.asarray(pred, jnp.float32)
    aa = jnp.asarray(aa, jnp.float32)
    target = jnp.asarray(target, jnp.float32)
    weight = jnp.asarray(weight, jnp.float32)
    rho_min = jnp.asarray(rho_min, jnp.float32).reshape(1, -1)
    rho_max = jnp.asarray(rho_max, jnp.float32).reshape(1, -1)

    B, GC = pred.shape
    C = target.shape[1]
    assert B == target.shape[0] and target.size > 0
    assert GC % C == 0
    G = GC // C
    assert G % NUM_NODES == 0
    T = G // NUM_NODES
    assert rho_min.shape[1] == T and rho_max.shape[1] == T
    S = GC + 2 * T + 1

    # ---- wrapper-side prep: layout plumbing on the small inputs only ----
    # One packed, lane-dense side array per row: [target tiled to G*C | a0 | a1 | w0].
    a0 = aa[:, 0::NUM_NODES]                                   # (B, T)
    a1 = aa[:, 1::NUM_NODES]                                   # (B, T)
    w0 = weight[:, 0:1]                                        # (B, 1)
    side = jnp.concatenate([jnp.tile(target, (1, G)), a0, a1, w0], axis=1)   # (B, S)

    # Resident constants: 0/1 tree->column expansion + per-column decay base/delta rows.
    col = np.arange(GC)
    tree_of_col = col // (NUM_NODES * C)                       # (GC,)
    node1_col = ((col // C) % NUM_NODES) == 1                  # (GC,) bool
    expand = jnp.asarray(
        (np.arange(T)[:, None] == tree_of_col[None, :]).astype(np.float32))  # (T, GC)
    rmin_col = rho_min[0, tree_of_col]                         # (GC,)
    rmax_col = rho_max[0, tree_of_col]                         # (GC,)
    node1 = jnp.asarray(node1_col)
    base_row = jnp.where(node1, rmin_col, rmax_col)[None, :]   # decay if node0 is argmax (ties)
    win1_row = jnp.where(node1, rmax_col, rmin_col)[None, :]   # decay if node1 is argmax
    diff_row = win1_row - base_row                             # (1, GC)

    # ---- row tiling: biggest tile that keeps double-buffered blocks inside the VMEM budget ----
    vmem_limit = _vmem_limit_bytes()
    padded_lanes = _round_up(GC, 128) + _round_up(S, 128)      # padded f32 lanes per row in VMEM
    bytes_per_row = 2 * 4 * padded_lanes                       # x2 pipeline buffers
    cap = max(8, ((vmem_limit // 3) // bytes_per_row) // 8 * 8)
    if max_rows_per_tile is not None:
        cap = max(8, min(cap, (max_rows_per_tile // 8) * 8))

    if B <= cap:
        TB, num_tiles = B, 1            # single full-extent block: always layout-legal
    else:
        TB = cap                        # multiple of 8
        num_tiles = -(-B // TB)
    needs_mask = (num_tiles * TB != B)

    # reduction='mean' over the (B, G) weighted loss, then 2/G, then loss_weight -> one constant.
    scale = float(loss_weight) * 2.0 / float(B * G * G)
    kernel = _make_kernel(B, GC, T, TB, num_tiles, scale, needs_mask)

    cost = pl.CostEstimate(
        flops=int(B * GC * (5 + 2 * T)),
        transcendentals=0,
        bytes_accessed=int(4 * (B * (GC + S) + (T + 2) * GC + 1)))

    out = pl.pallas_call(
        kernel,
        out_shape=jax.ShapeDtypeStruct((1, 1), jnp.float32),
        grid=(num_tiles,),
        in_specs=[
            pl.BlockSpec((T, GC), lambda i: (0, 0)),           # expansion matrix (resident)
            pl.BlockSpec((1, GC), lambda i: (0, 0)),           # decay base row   (resident)
            pl.BlockSpec((1, GC), lambda i: (0, 0)),           # decay delta row  (resident)
            pl.BlockSpec((TB, GC), lambda i: (i, 0)),          # pred row tile
            pl.BlockSpec((TB, S), lambda i: (i, 0)),           # packed side row tile
        ],
        out_specs=pl.BlockSpec((1, 1), lambda i: (0, 0)),
        scratch_shapes=[pltpu.VMEM((1, GC), jnp.float32)],     # lane-wide accumulator
        compiler_params=pltpu.CompilerParams(
            dimension_semantics=("arbitrary",),                # B axis reduces to one scalar
            vmem_limit_bytes=int(vmem_limit)),
        cost_estimate=cost,
    )(expand, base_row, diff_row, pred, side)
    return out[0, 0]


def nsl1_loss_reference(pred, aa, target, weight, rho_min, rho_max, loss_weight=1.0):
    """Pure-numpy transcription of the torch forward (with fixed rho values)."""
    p = np.asarray(pred, np.float64)
    t = np.asarray(target, np.float64)
    a = np.asarray(aa, np.float64)
    w = np.asarray(weight, np.float64)
    rmin = np.asarray(rho_min, np.float64).reshape(-1)
    rmax = np.asarray(rho_max, np.float64).reshape(-1)

    B, GC = p.shape
    C = t.shape[1]
    G = GC // C
    T = G // NUM_NODES

    loss_ns = np.stack(
        [np.sum(np.abs(p[:, i * C:(i + 1) * C] - t), axis=1) for i in range(G)],
        axis=1)                                    # (B, G)
    loss_ns = loss_ns.reshape(B, T, NUM_NODES)
    aa_r = a.reshape(B, T, NUM_NODES)
    target_n = np.argmax(aa_r, axis=2)             # (B, T), ties -> 0

    decay = np.ones_like(loss_ns)
    inds = np.arange(B)
    for i in range(T):
        decay[:, i, :] = rmin[i]
        decay[inds, i, target_n[:, i]] = rmax[i]

    loss = (loss_ns * decay).reshape(B, -1)        # (B, G)
    loss = loss * w[:, 0:1]                        # weight[:, 0].unsqueeze(1)
    loss = loss.mean()                             # reduction='mean', no avg_factor
    return loss_weight * 2.0 * loss / G


if __name__ == "__main__":
    # Small shapes consistent with the module: C=4 bbox coords, groups_=8 -> num_trees=4.
    B, C, G = 8, 4, 8
    T = G // NUM_NODES

    key = jax.random.PRNGKey(0)
    k1, k2, k3, k4, k5, k6 = jax.random.split(key, 6)
    pred = jax.random.normal(k1, (B, G * C), dtype=jnp.float32)
    target = jax.random.normal(k2, (B, C), dtype=jnp.float32)
    aa = jax.random.uniform(k3, (B, G), dtype=jnp.float32)
    weight = jax.random.uniform(k4, (B, 4), dtype=jnp.float32)
    rho_min = jax.random.uniform(k5, (1, T), minval=0.1, maxval=0.3, dtype=jnp.float32)
    rho_max = jax.random.uniform(k6, (1, T), minval=0.9, maxval=1.1, dtype=jnp.float32)

    out = nsl1_loss_pallas(pred, aa, target, weight, rho_min, rho_max, loss_weight=1.0)
    out = jax.block_until_ready(out)
    ref = nsl1_loss_reference(pred, aa, target, weight, rho_min, rho_max, loss_weight=1.0)
    assert abs(float(out) - float(ref)) < 1e-4 * max(1.0, abs(float(ref))), \
        (float(out), float(ref))

    # Case 2: force the multi-tile pipelined path with a ragged, pl.when-gated masked last tile.
    B2 = 70
    j1, j2, j3, j4 = jax.random.split(jax.random.PRNGKey(1), 4)
    pred2 = jax.random.normal(j1, (B2, G * C), dtype=jnp.float32)
    target2 = jax.random.normal(j2, (B2, C), dtype=jnp.float32)
    aa2 = jax.random.uniform(j3, (B2, G), dtype=jnp.float32)
    weight2 = jax.random.uniform(j4, (B2, 4), dtype=jnp.float32)
    out2 = nsl1_loss_pallas(pred2, aa2, target2, weight2, rho_min, rho_max,
                            loss_weight=1.0, max_rows_per_tile=32)
    out2 = jax.block_until_ready(out2)
    ref2 = nsl1_loss_reference(pred2, aa2, target2, weight2, rho_min, rho_max, loss_weight=1.0)
    assert abs(float(out2) - float(ref2)) < 1e-4 * max(1.0, abs(float(ref2))), \
        (float(out2), float(ref2))

    # Case 3: larger batch on the auto-derived (single fat tile) path.
    B3 = 2600
    m1, m2, m3, m4 = jax.random.split(jax.random.PRNGKey(2), 4)
    pred3 = jax.random.normal(m1, (B3, G * C), dtype=jnp.float32)
    target3 = jax.random.normal(m2, (B3, C), dtype=jnp.float32)
    aa3 = jax.random.uniform(m3, (B3, G), dtype=jnp.float32)
    weight3 = jax.random.uniform(m4, (B3, 4), dtype=jnp.float32)
    out3 = nsl1_loss_pallas(pred3, aa3, target3, weight3, rho_min, rho_max, loss_weight=1.0)
    out3 = jax.block_until_ready(out3)
    ref3 = nsl1_loss_reference(pred3, aa3, target3, weight3, rho_min, rho_max, loss_weight=1.0)
    assert abs(float(out3) - float(ref3)) < 1e-3 * max(1.0, abs(float(ref3))), \
        (float(out3), float(ref3))

    print("KERNEL_OK")
</pallas_src>

<mosaic_0001>
module attributes {stable_mosaic.version = 11 : i64} {
  func.func @kernel(%arg0: i32, %arg1: memref<4x32xf32, #tpu.memory_space<vmem>>, %arg2: memref<1x32xf32, #tpu.memory_space<vmem>>, %arg3: memref<1x32xf32, #tpu.memory_space<vmem>>, %arg4: memref<8x32xf32, #tpu.memory_space<vmem>>, %arg5: memref<8x41xf32, #tpu.memory_space<vmem>>, %arg6: memref<1x1xf32, #tpu.memory_space<vmem>>, %arg7: memref<1x32xf32, #tpu.memory_space<vmem>>) attributes {dimension_semantics = [#tpu.dimension_semantics<arbitrary>], iteration_bounds = array<i64: 1>, scalar_prefetch = 0 : i64, scratch_operands = 1 : i64, tpu.core_type = #tpu.core_type<tc>, window_params = [{pipeline_mode = #tpu.pipeline_mode<synchronous>, transform_indices = @transform_0, window_bounds = array<i64: 4, 32>}, {pipeline_mode = #tpu.pipeline_mode<synchronous>, transform_indices = @transform_1, window_bounds = array<i64: 1, 32>}, {pipeline_mode = #tpu.pipeline_mode<synchronous>, transform_indices = @transform_2, window_bounds = array<i64: 1, 32>}, {transform_indices = @transform_3, window_bounds = array<i64: 8, 32>}, {transform_indices = @transform_4, window_bounds = array<i64: 8, 41>}, {pipeline_mode = #tpu.pipeline_mode<synchronous>, transform_indices = @transform_5, window_bounds = array<i64: 1, 1>}]} {
    %c0_i32 = arith.constant 0 : i32
    %0 = arith.cmpi eq, %arg0, %c0_i32 : i32
    %1 = arith.extui %0 : i1 to i32
    %c0_i32_0 = arith.constant 0 : i32
    %2 = arith.cmpi ne, %1, %c0_i32_0 : i32
    scf.if %2 {
      %cst_20 = arith.constant 0.000000e+00 : f32
      %32 = vector.broadcast %cst_20 : f32 to vector<1x32xf32>
      %c0_21 = arith.constant 0 : index
      %c0_22 = arith.constant 0 : index
      %33 = vector.load %arg7[%c0_21, %c0_22] : memref<1x32xf32, #tpu.memory_space<vmem>>, vector<1x32xf32>
      tpu.vector_store %arg7[%c0_21, %c0_22], %32 {strides = array<i32>} : memref<1x32xf32, #tpu.memory_space<vmem>>, vector<1x32xf32>,
      %cst_23 = arith.constant 0.000000e+00 : f32
      %34 = vector.broadcast %cst_23 : f32 to vector<1x1xf32>
      %c0_24 = arith.constant 0 : index
      %c0_25 = arith.constant 0 : index
      %35 = vector.load %arg6[%c0_24, %c0_25] : memref<1x1xf32, #tpu.memory_space<vmem>>, vector<1x1xf32>
      tpu.vector_store %arg6[%c0_24, %c0_25], %34 {strides = array<i32>} : memref<1x1xf32, #tpu.memory_space<vmem>>, vector<1x1xf32>,
    } else {
    }
    %c0 = arith.constant 0 : index
    %c0_1 = arith.constant 0 : index
    %3 = vector.load %arg5[%c0, %c0_1] : memref<8x41xf32, #tpu.memory_space<vmem>>, vector<8x32xf32>
    %c0_2 = arith.constant 0 : index
    %c32 = arith.constant 32 : index
    %4 = vector.load %arg5[%c0_2, %c32] : memref<8x41xf32, #tpu.memory_space<vmem>>, vector<8x4xf32>
    %c0_3 = arith.constant 0 : index
    %c36 = arith.constant 36 : index
    %5 = vector.load %arg5[%c0_3, %c36] : memref<8x41xf32, #tpu.memory_space<vmem>>, vector<8x4xf32>
    %c0_4 = arith.constant 0 : index
    %c40 = arith.constant 40 : index
    %6 = vector.load %arg5[%c0_4, %c40] : memref<8x41xf32, #tpu.memory_space<vmem>>, vector<8x1xf32>
    %c0_5 = arith.constant 0 : index
    %c0_6 = arith.constant 0 : index
    %7 = vector.load %arg4[%c0_5, %c0_6] : memref<8x32xf32, #tpu.memory_space<vmem>>, vector<8x32xf32>
    %8 = arith.subf %7, %3 : vector<8x32xf32>
    %9 = math.absf %8 : vector<8x32xf32>
    %10 = arith.cmpf ogt, %5, %4 : vector<8x4xf32>
    %11 = arith.extui %10 : vector<8x4xi1> to vector<8x4xi32>
    %12 = arith.sitofp %11 : vector<8x4xi32> to vector<8x4xf32>
    %c0_7 = arith.constant 0 : index
    %c0_8 = arith.constant 0 : index
    %13 = vector.load %arg1[%c0_7, %c0_8] : memref<4x32xf32, #tpu.memory_space<vmem>>, vector<4x32xf32>
    %cst = arith.constant dense<0.000000e+00> : vector<8x32xf32>
    %14 = tpu.matmul %12, %13, %cst {dimension_numbers = #tpu.dot_dimension_numbers<[1], [0], [0], [1], [0, 0, 1, 1], [], []>} : vector<8x4xf32>, vector<4x32xf32>, vector<8x32xf32> -> vector<8x32xf32>
    %c0_9 = arith.constant 0 : index
    %c0_10 = arith.constant 0 : index
    %15 = vector.load %arg2[%c0_9, %c0_10] : memref<1x32xf32, #tpu.memory_space<vmem>>, vector<1x32xf32>
    %c0_11 = arith.constant 0 : index
    %c0_12 = arith.constant 0 : index
    %16 = vector.load %arg3[%c0_11, %c0_12] : memref<1x32xf32, #tpu.memory_space<vmem>>, vector<1x32xf32>
    %17 = vector.broadcast %16 : vector<1x32xf32> to vector<8x32xf32>
    %18 = arith.mulf %14, %17 : vector<8x32xf32>
    %19 = vector.broadcast %15 : vector<1x32xf32> to vector<8x32xf32>
    %20 = arith.addf %19, %18 : vector<8x32xf32>
    %21 = arith.mulf %9, %20 : vector<8x32xf32>
    %22 = vector.broadcast %6 : vector<8x1xf32> to vector<8x32xf32>
    %23 = arith.mulf %21, %22 : vector<8x32xf32>
    %c0_13 = arith.constant 0 : index
    %c0_14 = arith.constant 0 : index
    %24 = vector.load %arg7[%c0_13, %c0_14] : memref<1x32xf32, #tpu.memory_space<vmem>>, vector<1x32xf32>
    %cst_15 = arith.constant dense<0.000000e+00> : vector<32xf32>
    %25 = vector.multi_reduction <add>, %23, %cst_15 [0] : vector<8x32xf32> to vector<32xf32>
    %26 = vector.shape_cast %25 : vector<32xf32> to vector<1x32xf32>
    %27 = arith.addf %24, %26 : vector<1x32xf32>
    %c0_16 = arith.constant 0 : index
    %c0_17 = arith.constant 0 : index
    %28 = vector.load %arg7[%c0_16, %c0_17] : memref<1x32xf32, #tpu.memory_space<vmem>>, vector<1x32xf32>
    tpu.vector_store %arg7[%c0_16, %c0_17], %27 {strides = array<i32>} : memref<1x32xf32, #tpu.memory_space<vmem>>, vector<1x32xf32>,
    %c0_i32_18 = arith.constant 0 : i32
    %29 = arith.cmpi eq, %arg0, %c0_i32_18 : i32
    %30 = arith.extui %29 : i1 to i32
    %c0_i32_19 = arith.constant 0 : i32
    %31 = arith.cmpi ne, %30, %c0_i32_19 : i32
    scf.if %31 {
      %c0_20 = arith.constant 0 : index
      %c0_21 = arith.constant 0 : index
      %32 = vector.load %arg7[%c0_20, %c0_21] : memref<1x32xf32, #tpu.memory_space<vmem>>, vector<1x32xf32>
      %33 = vector.shape_cast %32 : vector<1x32xf32> to vector<1x1x32xf32>
      %cst_22 = arith.constant dense<0.000000e+00> : vector<1xf32>
      %34 = vector.multi_reduction <add>, %33, %cst_22 [1, 2] : vector<1x1x32xf32> to vector<1xf32>
      %35 = vector.shape_cast %34 : vector<1xf32> to vector<1x1x1xf32>
      %36 = vector.extract %35[0, 0, 0] : f32 from vector<1x1x1xf32>
      %37 = vector.broadcast %36 : f32 to vector<1x1xf32>
      %cst_23 = arith.constant 3.906250e-03 : f32
      %38 = vector.broadcast %cst_23 : f32 to vector<1x1xf32>
      %39 = arith.mulf %37, %38 : vector<1x1xf32>
      %c0_24 = arith.constant 0 : index
      %c0_25 = arith.constant 0 : index
      %40 = vector.load %arg6[%c0_24, %c0_25] : memref<1x1xf32, #tpu.memory_space<vmem>>, vector<1x1xf32>
      tpu.vector_store %arg6[%c0_24, %c0_25], %39 {strides = array<i32>} : memref<1x1xf32, #tpu.memory_space<vmem>>, vector<1x1xf32>,
    } else {
    }
    return
  }
  func.func @transform_0(%arg0: i32) -> (i32, i32) {
    %c0_i32 = arith.constant 0 : i32
    %c0_i32_0 = arith.constant 0 : i32
    %c0_i32_1 = arith.constant 0 : i32
    return %c0_i32, %c0_i32_0 : i32, i32
  }
  func.func @transform_1(%arg0: i32) -> (i32, i32) {
    %c0_i32 = arith.constant 0 : i32
    %c0_i32_0 = arith.constant 0 : i32
    %c0_i32_1 = arith.constant 0 : i32
    return %c0_i32, %c0_i32_0 : i32, i32
  }
  func.func @transform_2(%arg0: i32) -> (i32, i32) {
    %c0_i32 = arith.constant 0 : i32
    %c0_i32_0 = arith.constant 0 : i32
    %c0_i32_1 = arith.constant 0 : i32
    return %c0_i32, %c0_i32_0 : i32, i32
  }
  func.func @transform_3(%arg0: i32) -> (i32, i32) {
    %c0_i32 = arith.constant 0 : i32
    %c0_i32_0 = arith.constant 0 : i32
    return %arg0, %c0_i32 : i32, i32
  }
  func.func @transform_4(%arg0: i32) -> (i32, i32) {
    %c0_i32 = arith.constant 0 : i32
    %c0_i32_0 = arith.constant 0 : i32
    return %arg0, %c0_i32 : i32, i32
  }
  func.func @transform_5(%arg0: i32) -> (i32, i32) {
    %c0_i32 = arith.constant 0 : i32
    %c0_i32_0 = arith.constant 0 : i32
    %c0_i32_1 = arith.constant 0 : i32
    return %c0_i32, %c0_i32_0 : i32, i32
  }
}

</mosaic_0001>

<llo_original>
// kernel: tpu_custom_call.1
$region0: #{tpu_custom_call.1}
  #allocation0 [shape = 'u32[]', space=smem, size = 0x4, offset = 0x4, fixed_abs, tag = 'smem constant byte address 0x4 - core index']
  #allocation1 [shape = 'u32[72,128]{1,0:T(1,128)}', space=vmem, size = 0x9000, scoped, tag = 'internal scratch']
  #allocation2 [shape = 'f32[1,32]{1,0:T(1,128)}', space=vmem, size = 0x200, scoped, tag = 'scratch operand']
  %s0 = inlined_call_operand.hbm [shape: f32[4,32], index: 0, kind: input, shape index: {}]
  %s1 = inlined_call_operand.hbm [shape: f32[1,32], index: 1, kind: input, shape index: {}]
  %s2 = inlined_call_operand.vmem [shape: f32[1,32], index: 2, kind: input, shape index: {}]
  %s3 = inlined_call_operand.hbm [shape: f32[8,32], index: 3, kind: input, shape index: {}]
  %s4 = inlined_call_operand.hbm [shape: f32[8,41], index: 4, kind: input, shape index: {}]
  %s5 = inlined_call_operand.hbm [shape: f32[1,1], index: 5, kind: output, shape index: {}]
  %s6 = sld [smem:[#allocation0]]
  $region54: #{tpu_custom_call.1} parent=0
    _
  %s8 = ssub.s32 1, %s6
  %s9 = scalar_select 0, %s8, %s6
  $region1: #{tpu_custom_call.1} parent=0
    #allocation3 [shape = 'u8[2048]{0}', space=vmem, size = 0x800, scoped, tag = 'input window, operand 0, single buffered']
    #allocation4 [shape = 's32[1]{0}', space=sflag, size = 0x4, scoped, tag = 'scoped memory for tpu_custom_call.1']
    #allocation5 [shape = 's32[1]{0}', space=sflag, size = 0x4, scoped, tag = 'scoped memory for tpu_custom_call.1']
    #allocation6 [shape = 'u8[512]{0}', space=vmem, size = 0x400, scoped, tag = 'input window, operand 1, single buffered']
    #allocation7 [shape = 's32[1]{0}', space=sflag, size = 0x4, scoped, tag = 'scoped memory for tpu_custom_call.1']
    #allocation8 [shape = 'u8[4096]{0}', space=vmem, size = 0x1000, scoped, tag = 'input window, operand 3, single buffered']
    #allocation9 [shape = 'u8[4096]{0}', space=vmem, size = 0x1000, scoped, tag = 'input window, operand 4, single buffered']
    #allocation10 [shape = 's32[1]{0}', space=sflag, size = 0x4, scoped, tag = 'scoped memory for tpu_custom_call.1']
    #allocation11 [shape = 'u8[512]{0}', space=vmem, size = 0x400, scoped, tag = 'output window, operand 0, single buffered']
    %10 = vsyncpa [#allocation4], 0
    %11 = vsyncpa [#allocation7], 0
    %12 = vsyncpa [#allocation10], 0
    %13 = vsyncpa [#allocation5], 0
    // Predicated region
    $region2: #{tpu_custom_call.1} parent=1 // pred_check
      _
    $region3: #{tpu_custom_call.1} parent=1 // pred_check_branch
      %15 = sbr.rel (0) target = $region5
    $region4: #{tpu_custom_call.1} parent=1 // pred_region
      %17 = vsyncadd [#allocation4], 0
      %s19 = sshll.u32 %s0, 4
      %s20 = int_to_ptr.hbm [resolvable:$true] %s19
      %s21 = sshll.u32 [#allocation3], 4
      %s22 = int_to_ptr.vmem [resolvable:$true] %s21
      %24 = dma.hbm_to_vmem [thread:$0]  %s20, 64, %s22, [#allocation4]
    $region5: #{tpu_custom_call.1} parent=1 // pred_fallthru
      _
    // Predicated region
    $region6: #{tpu_custom_call.1} parent=1 // pred_check
      _
    $region7: #{tpu_custom_call.1} parent=1 // pred_check_branch
      %26 = sbr.rel (0) target = $region9
    $region8: #{tpu_custom_call.1} parent=1 // pred_region
      %28 = vsyncadd [#allocation7], 0
      %s30 = sshll.u32 %s1, 4
      %s31 = int_to_ptr.hbm [resolvable:$true] %s30
      %s32 = sshll.u32 [#allocation6], 4
      %s33 = int_to_ptr.vmem [resolvable:$true] %s32
      %35 = dma.hbm_to_vmem [thread:$0]  %s31, 16, %s33, [#allocation7]
    $region9: #{tpu_custom_call.1} parent=1 // pred_fallthru
      _
    // Predicated region
    $region10: #{tpu_custom_call.1} parent=1 // pred_check
      _
    $region11: #{tpu_custom_call.1} parent=1 // pred_check_branch
      %37 = sbr.rel (0) target = $region13
    $region12: #{tpu_custom_call.1} parent=1 // pred_region
      _
    $region13: #{tpu_custom_call.1} parent=1 // pred_fallthru
      _
    // Predicated region
    $region14: #{tpu_custom_call.1} parent=1 // pred_check
      _
    $region15: #{tpu_custom_call.1} parent=1 // pred_check_branch
      %39 = sbr.rel (0) target = $region17
    $region16: #{tpu_custom_call.1} parent=1 // pred_region
      %41 = vsyncadd [#allocation7], 0
      %s43 = sshll.u32 %s3, 4
      %s44 = int_to_ptr.hbm [resolvable:$true] %s43
      %s45 = sshll.u32 [#allocation8], 4
      %s46 = int_to_ptr.vmem [resolvable:$true] %s45
      %48 = dma.hbm_to_vmem [thread:$0]  %s44, 128, %s46, [#allocation7]
    $region17: #{tpu_custom_call.1} parent=1 // pred_fallthru
      _
    // Predicated region
    $region18: #{tpu_custom_call.1} parent=1 // pred_check
      _
    $region19: #{tpu_custom_call.1} parent=1 // pred_check_branch
      %50 = sbr.rel (0) target = $region21
    $region20: #{tpu_custom_call.1} parent=1 // pred_region
      %52 = vsyncadd [#allocation10], 0
      %s54 = sshll.u32 %s4, 4
      %s55 = int_to_ptr.hbm [resolvable:$true] %s54
      %s56 = sshll.u32 [#allocation9], 4
      %s57 = int_to_ptr.vmem [resolvable:$true] %s56
      %59 = dma.hbm_to_vmem [thread:$0]  %s55, 128, %s57, [#allocation10]
    $region21: #{tpu_custom_call.1} parent=1 // pred_fallthru
      _
    // Predicated region
    $region22: #{tpu_custom_call.1} parent=1 // pred_check
      _
    $region23: #{tpu_custom_call.1} parent=1 // pred_check_branch
      %61 = sbr.rel (0) target = $region25
    $region24: #{tpu_custom_call.1} parent=1 // pred_region
      %63 = dma.done [#allocation4], 64
    $region25: #{tpu_custom_call.1} parent=1 // pred_fallthru
      _
    // Predicated region
    $region26: #{tpu_custom_call.1} parent=1 // pred_check
      _
    $region27: #{tpu_custom_call.1} parent=1 // pred_check_branch
      %65 = sbr.rel (0) target = $region29
    $region28: #{tpu_custom_call.1} parent=1 // pred_region
      %67 = dma.done [#allocation7], 16
    $region29: #{tpu_custom_call.1} parent=1 // pred_fallthru
      _
    // Predicated region
    $region30: #{tpu_custom_call.1} parent=1 // pred_check
      _
    $region31: #{tpu_custom_call.1} parent=1 // pred_check_branch
      %69 = sbr.rel (0) target = $region33
    $region32: #{tpu_custom_call.1} parent=1 // pred_region
      %71 = dma.done [#allocation7], 128
    $region33: #{tpu_custom_call.1} parent=1 // pred_fallthru
      _
    // Predicated region
    $region34: #{tpu_custom_call.1} parent=1 // pred_check
      _
    $region35: #{tpu_custom_call.1} parent=1 // pred_check_branch
      %73 = sbr.rel (0) target = $region37
    $region36: #{tpu_custom_call.1} parent=1 // pred_region
      %75 = dma.done [#allocation10], 128
    $region37: #{tpu_custom_call.1} parent=1 // pred_fallthru
      _
    %p76 = scmp.eq.s32.totalorder 0, 0
    // Predicated region
    $region38: #{tpu_custom_call.1} parent=1 // pred_check
      %p77 = pneg %p76
    $region39: #{tpu_custom_call.1} parent=1 // pred_check_branch
      %79 = sbr.rel (%p77) target = $region41
    $region40: #{tpu_custom_call.1} parent=1 // pred_region
      %vm80 = vcmask 253952
      %81 = vst.msk [vmem:[#allocation2] sm:$0x1] %vm80, 0.0
      %vm82 = vcmask 0
      %83 = vst.msk [vmem:[#allocation11] sm:$0x1] %vm82, 0.0
    $region41: #{tpu_custom_call.1} parent=1 // pred_fallthru
      _
    %v84 = vld [vmem:[#allocation9] sm:$0xff]
    %v85 = vld [vmem:[#allocation8] sm:$0xff]
    %v86 = vsub.f32 %v85, %v84
    %v87 = vand.u32 2147483647, %v86
    %89 = vrot.lane.b32.xlu0 %v84, 4
    %v90 = vpop.permute.xlu0 %89
    %vm92 = vcmp.gt.f32.partialorder %v84, %v90
    %v93 = vsel %vm92, 1, 0
    %v94 = vcvt.s32.f32 %v93
    %v95 = vld [vmem:[#allocation3] sm:$0xf]
    %97 = vrot.lane.b32.xlu0 %v94, 92
    %v98 = vpop.permute.xlu0 %97
    %vm99 = vcmask 31744
    %v100 = vsel %vm99, %v98, 0
    %vm102 = vcmask 1043456
    %v104 = vsel %vm102, %v95, 0
    %106 = vmatpush.msra.mxu0 0.0
    %107 = vmatpush.msra.mxu0 0.0
    %108 = vmatpush.msra.mxu0 0.0
    %109 = vmatpush.msra.mxu0 0.0
    %110 = vmatpush.msra.mxu0 0.0
    %111 = vmatpush.msra.mxu0 0.0
    %112 = vmatpush.msra.mxu0 0.0
    %113 = vmatpush.msra.mxu0 0.0
    %114 = vmatpush.msra.mxu0 0.0
    %115 = vmatpush.msra.mxu0 0.0
    %116 = vmatpush.msra.mxu0 0.0
    %117 = vmatpush.msra.mxu0 0.0
    %118 = vmatpush.msra.mxu0 0.0
    %119 = vmatpush.msra.mxu0 0.0
    %120 = vmatpush.msra.mxu0 0.0
    %121 = vmatpush.msra.mxu0 %v104
    %122 = vmatmul.f32.gmra.mxu0 %v100
    %v123 = vpop.f32.mrf.mxu0
    %v124 = vadd.f32 0.0, %v123
    %125 = vdwg.mxu0
    %v126 = vld [vmem:[#allocation6] sm:$0x1]
    %v127 = vld [vmem:[%s2] sm:$0x1]
    %v129 = vperm.slane %v127, 0
    %v131 = vmul.f32 %v124, %v129
    %v133 = vperm.slane %v126, 0
    %v135 = vadd.f32 %v133, %v131
    %v136 = vmul.f32 %v87, %v135
    %137 = vset.pattern.permute.xlu0 40
    %138 = vperm.xlu0 %137, %v84
    %v139 = vpop.permute.xlu0 %138
    %v141 = vmul.f32 %v136, %v139
    %v142 = vld [vmem:[#allocation2] sm:$0x1]
    %vm143 = vcmask 261120
    %v144 = vsel %vm143, %v141, 0.0
    %v145 = vrot.slane %v144, 4
    %v146 = vadd.f32 %v144, %v145
    %v147 = vrot.slane %v146, 2
    %v148 = vadd.f32 %v146, %v147
    %v149 = vrot.slane %v148, 1
    %v150 = vadd.f32 %v148, %v149
    %v151 = vadd.f32 %v142, %v150
    %vm152 = vcmask 253952
    %153 = vst.msk [vmem:[#allocation2] sm:$0x1] %vm152, %v151
    // Predicated region
    $region42: #{tpu_custom_call.1} parent=1 // pred_check
      %p154 = pneg %p76
    $region43: #{tpu_custom_call.1} parent=1 // pred_check_branch
      %156 = sbr.rel (%p154) target = $region45
    $region44: #{tpu_custom_call.1} parent=1 // pred_region
      %v157 = vld [vmem:[#allocation2] sm:$0x1]
      %v158 = vsel %vm152, %v157, 0.0
      %159 = vadd.xlane.f32.xlu0 %v158
      %v160 = vpop.xlane.xlu0 %159
      %v161 = vrot.slane %v160, 4
      %v162 = vadd.f32 %v160, %v161
      %v163 = vrot.slane %v162, 2
      %v164 = vadd.f32 %v162, %v163
      %v165 = vrot.slane %v164, 1
      %v166 = vadd.f32 %v164, %v165
      %s167 = vtos %v166
      %v168 = vstv %s167
      %v169 = vmul.f32 %v168, 0.00390625
      %vm170 = vcmask 0
      %171 = vst.msk [vmem:[#allocation11] sm:$0x1] %vm170, %v169
    $region45: #{tpu_custom_call.1} parent=1 // pred_fallthru
      _
    // Predicated region
    $region46: #{tpu_custom_call.1} parent=1 // pred_check
      _
    $region47: #{tpu_custom_call.1} parent=1 // pred_check_branch
      %173 = sbr.rel (0) target = $region49
    $region48: #{tpu_custom_call.1} parent=1 // pred_region
      %175 = vsyncadd [#allocation5], 0
      %s177 = sshll.u32 [#allocation11], 4
      %s178 = int_to_ptr.vmem [resolvable:$true] %s177
      %s179 = sshll.u32 %s5, 4
      %s180 = int_to_ptr.hbm [resolvable:$true] %s179
      %182 = dma.vmem_to_hbm [thread:$0]  %s178, 16, %s180, [#allocation5]
    $region49: #{tpu_custom_call.1} parent=1 // pred_fallthru
      _
    // Predicated region
    $region50: #{tpu_custom_call.1} parent=1 // pred_check
      _
    $region51: #{tpu_custom_call.1} parent=1 // pred_check_branch
      %184 = sbr.rel (0) target = $region53
    $region52: #{tpu_custom_call.1} parent=1 // pred_region
      %186 = dma.done [#allocation5], 16
    $region53: #{tpu_custom_call.1} parent=1 // pred_fallthru
      _
    %187 = vsyncpa [#allocation4], 1
    %188 = vsyncpa [#allocation7], 1
    %189 = vsyncpa [#allocation10], 1
    %190 = vsyncpa [#allocation5], 1

</llo_original>
